<compile_context>
chip_gen: v5e
topology: v5e:2x2
jax: 0.10.0
libtpu: 0.0.40
codegen_flags: <defaults>
</compile_context>

<pallas_src>
import jax
import jax.numpy as jnp
from jax.experimental import pallas as pl
from jax.experimental.pallas import tpu as pltpu

H1, H2 = 100, 500            # logical hidden sizes from the PyTorch module
H1_PAD, H2_PAD = 128, 512    # lane-aligned padded sizes
W3T_ROWS = 8                 # final weight stored as (8, H2_PAD); row 0 is real


def _cdiv(a, b):
    return (a + b - 1) // b


def _round_up(n, m):
    return ((n + m - 1) // m) * m


def _mlp_kernel(x_ref, w1_ref, b1_ref, w2_ref, b2_ref, w3t_ref, b3_ref, o_ref):
    cdtype = w1_ref.dtype
    tile = x_ref.shape[0]

    # Layer 1: (tile, D) @ (D, 128) on the MXU, f32 accumulation; bias+ReLU on VPU.
    h = jnp.dot(x_ref[...].astype(cdtype), w1_ref[...],
                preferred_element_type=jnp.float32) + b1_ref[...]
    h = jnp.maximum(h, 0.0)

    # Layer 2: (tile, 128) @ (128, 512).
    h = jnp.dot(h.astype(cdtype), w2_ref[...],
                preferred_element_type=jnp.float32) + b2_ref[...]
    h = jnp.maximum(h, 0.0)

    # Layer 3 in "NT" orientation: (8, 512) x (tile, 512)^T -> (8, tile).
    # The result is batch-on-lanes, so the store below is one lane-dense row
    # (no 1->128 column padding, no 128x HBM write amplification).
    r = jnp.einsum("ok,nk->on", w3t_ref[...], h.astype(cdtype),
                   preferred_element_type=jnp.float32)
    row = jnp.maximum(r[0:1, :] + b3_ref[...], 0.0)            # (1, tile)
    o_ref[...] = row.reshape(1, 1, tile).astype(o_ref.dtype)


def prepare_params(params, compute_dtype=jnp.bfloat16):
    """Pad/cast weights once; reuse the result across forward calls.

    Zero padding keeps the padded lanes exactly inert through bias-add + ReLU.
    The final layer is stored transposed (out-features major, padded to 8 rows)
    so the kernel can emit a lane-dense output row.
    """
    w1, b1 = params["w1"], params["b1"]
    w2, b2 = params["w2"], params["b2"]
    w3, b3 = params["w3"], params["b3"]

    w1p = jnp.pad(w1, ((0, 0), (0, H1_PAD - H1))).astype(compute_dtype)
    b1p = jnp.pad(b1.reshape(1, H1), ((0, 0), (0, H1_PAD - H1))).astype(jnp.float32)
    w2p = jnp.pad(w2, ((0, H1_PAD - H1), (0, H2_PAD - H2))).astype(compute_dtype)
    b2p = jnp.pad(b2.reshape(1, H2), ((0, 0), (0, H2_PAD - H2))).astype(jnp.float32)
    w3t = jnp.zeros((W3T_ROWS, H2_PAD), compute_dtype)
    w3t = w3t.at[0, :H2].set(w3.reshape(H2).astype(compute_dtype))
    b3p = jnp.asarray(b3, jnp.float32).reshape(1, 1)
    return {"w1": w1p, "b1": b1p, "w2": w2p, "b2": b2p, "w3t": w3t, "b3": b3p}


def mlp_forward(x, params, *, batch_tile=1024, compute_dtype=jnp.bfloat16):
    """x: [B, input_dim]. params: raw dict (w1,b1,...) or prepare_params() output."""
    if "w3t" not in params:          # convenience path: prepare on the fly
        params = prepare_params(params, compute_dtype)
    cdtype = params["w1"].dtype
    sublane = 16 if cdtype.itemsize < 4 else 8   # bf16 packs (16,128) per vreg

    B, D = x.shape

    # Balanced batch tiling: >=2 grid steps when the batch allows (keeps both
    # v7x TensorCores busy), rows split evenly so padding waste is < sublane/step.
    steps = max(_cdiv(B, batch_tile), 1)
    if steps == 1 and B >= 2 * sublane:
        steps = 2
    tile = _round_up(_cdiv(B, steps), sublane)
    b_pad = tile * steps
    if b_pad != B:
        x = jnp.pad(x, ((0, b_pad - B), (0, 0)))

    # Weights (<0.5 MiB padded) use constant index maps -> fetched once and kept
    # VMEM-resident; only the batch dimension of x / out is tiled.
    out = pl.pallas_call(
        _mlp_kernel,
        out_shape=jax.ShapeDtypeStruct((steps, 1, tile), jnp.float32),
        grid_spec=pltpu.PrefetchScalarGridSpec(
            num_scalar_prefetch=0,
            grid=(steps,),
            in_specs=[
                pl.BlockSpec((tile, D), lambda i: (i, 0)),           # x batch tile
                pl.BlockSpec(params["w1"].shape, lambda i: (0, 0)),
                pl.BlockSpec(params["b1"].shape, lambda i: (0, 0)),
                pl.BlockSpec(params["w2"].shape, lambda i: (0, 0)),
                pl.BlockSpec(params["b2"].shape, lambda i: (0, 0)),
                pl.BlockSpec(params["w3t"].shape, lambda i: (0, 0)),
                pl.BlockSpec(params["b3"].shape, lambda i: (0, 0)),
            ],
            out_specs=pl.BlockSpec((1, 1, tile), lambda i: (i, 0, 0)),
        ),
        compiler_params=pltpu.CompilerParams(
            dimension_semantics=("parallel",),
            vmem_limit_bytes=32 * 1024 * 1024,
        ),
    )(x, params["w1"], params["b1"], params["w2"], params["b2"],
      params["w3t"], params["b3"])

    # (steps, 1, tile) -> flat batch order -> (B, 1); drops batch padding.
    return out.reshape(-1)[:B].reshape(B, 1)


def init_params(input_dim, key):
    """Deterministic init matching nn.Linear's U(-1/sqrt(fan_in), 1/sqrt(fan_in))."""
    ks = jax.random.split(key, 6)

    def linear(kw, kb, fan_in, fan_out):
        bound = 1.0 / jnp.sqrt(fan_in)
        w = jax.random.uniform(kw, (fan_in, fan_out), jnp.float32, -bound, bound)
        b = jax.random.uniform(kb, (1, fan_out), jnp.float32, -bound, bound)
        return w, b

    w1, b1 = linear(ks[0], ks[1], input_dim, H1)
    w2, b2 = linear(ks[2], ks[3], H1, H2)
    w3, b3 = linear(ks[4], ks[5], H2, 1)
    return {"w1": w1, "b1": b1, "w2": w2, "b2": b2, "w3": w3, "b3": b3}


def mlp_reference(x, p):
    h = jnp.maximum(x @ p["w1"] + p["b1"], 0.0)
    h = jnp.maximum(h @ p["w2"] + p["b2"], 0.0)
    return jnp.maximum(h @ p["w3"] + p["b3"], 0.0)


if __name__ == "__main__":
    key = jax.random.PRNGKey(0)
    k_x, k_p, k_x2 = jax.random.split(key, 3)

    batch, input_dim = 8, 32
    x = jax.random.normal(k_x, (batch, input_dim), jnp.float32)
    params = init_params(input_dim, k_p)
    ref = mlp_reference(x, params)

    # f32 compute path: bitwise-close to the JAX reference.
    prep_f32 = prepare_params(params, compute_dtype=jnp.float32)
    out = jax.block_until_ready(mlp_forward(x, prep_f32))
    assert out.shape == (batch, 1)
    assert jnp.allclose(out, ref, atol=1e-5, rtol=1e-5), "mismatch (f32 path)"

    # Default bf16 compute path (f32 accumulation), multi-step grid and a batch
    # that does not divide the tile; looser tolerance for bf16 matmul inputs.
    prep_bf16 = prepare_params(params)           # bf16 default
    batch2 = 300
    x2 = jax.random.normal(k_x2, (batch2, input_dim), jnp.float32)
    ref2 = mlp_reference(x2, params)
    out2 = jax.block_until_ready(mlp_forward(x2, prep_bf16))
    assert out2.shape == (batch2, 1)
    assert jnp.allclose(out2, ref2, atol=5e-2, rtol=5e-2), "mismatch (bf16 path)"

    # Convenience path (raw params, prepared on the fly) must also work.
    out3 = jax.block_until_ready(mlp_forward(x2, params, compute_dtype=jnp.bfloat16))
    assert jnp.allclose(out3, ref2, atol=5e-2, rtol=5e-2), "mismatch (raw params)"

    print("KERNEL_OK")
</pallas_src>

<mosaic_0001>
module attributes {stable_mosaic.version = 11 : i64} {
  func.func @_mlp_kernel(%arg0: i32, %arg1: memref<8x32xf32, #tpu.memory_space<vmem>>, %arg2: memref<32x128xf32, #tpu.memory_space<vmem>>, %arg3: memref<1x128xf32, #tpu.memory_space<vmem>>, %arg4: memref<128x512xf32, #tpu.memory_space<vmem>>, %arg5: memref<1x512xf32, #tpu.memory_space<vmem>>, %arg6: memref<8x512xf32, #tpu.memory_space<vmem>>, %arg7: memref<1x1xf32, #tpu.memory_space<vmem>>, %arg8: memref<1x1x8xf32, #tpu.memory_space<vmem>>) attributes {dimension_semantics = [#tpu.dimension_semantics<parallel>], iteration_bounds = array<i64: 1>, scalar_prefetch = 0 : i64, scratch_operands = 0 : i64, tpu.core_type = #tpu.core_type<tc>, window_params = [{transform_indices = @transform_0, window_bounds = array<i64: 8, 32>}, {pipeline_mode = #tpu.pipeline_mode<synchronous>, transform_indices = @transform_1, window_bounds = array<i64: 32, 128>}, {pipeline_mode = #tpu.pipeline_mode<synchronous>, transform_indices = @transform_2, window_bounds = array<i64: 1, 128>}, {pipeline_mode = #tpu.pipeline_mode<synchronous>, transform_indices = @transform_3, window_bounds = array<i64: 128, 512>}, {pipeline_mode = #tpu.pipeline_mode<synchronous>, transform_indices = @transform_4, window_bounds = array<i64: 1, 512>}, {pipeline_mode = #tpu.pipeline_mode<synchronous>, transform_indices = @transform_5, window_bounds = array<i64: 8, 512>}, {pipeline_mode = #tpu.pipeline_mode<synchronous>, transform_indices = @transform_6, window_bounds = array<i64: 1, 1>}, {transform_indices = @transform_7, window_bounds = array<i64: 1, 1, 8>}]} {
    %c0 = arith.constant 0 : index
    %c0_0 = arith.constant 0 : index
    %0 = vector.load %arg1[%c0, %c0_0] : memref<8x32xf32, #tpu.memory_space<vmem>>, vector<8x32xf32>
    %c0_1 = arith.constant 0 : index
    %c0_2 = arith.constant 0 : index
    %1 = vector.load %arg2[%c0_1, %c0_2] : memref<32x128xf32, #tpu.memory_space<vmem>>, vector<32x128xf32>
    %cst = arith.constant dense<0.000000e+00> : vector<8x128xf32>
    %2 = tpu.matmul %0, %1, %cst {dimension_numbers = #tpu.dot_dimension_numbers<[1], [0], [0], [1], [0, 0, 1, 1], [], []>} : vector<8x32xf32>, vector<32x128xf32>, vector<8x128xf32> -> vector<8x128xf32>
    %c0_3 = arith.constant 0 : index
    %c0_4 = arith.constant 0 : index
    %3 = vector.load %arg3[%c0_3, %c0_4] : memref<1x128xf32, #tpu.memory_space<vmem>>, vector<1x128xf32>
    %4 = vector.broadcast %3 : vector<1x128xf32> to vector<8x128xf32>
    %5 = arith.addf %2, %4 : vector<8x128xf32>
    %cst_5 = arith.constant 0.000000e+00 : f32
    %6 = vector.broadcast %cst_5 : f32 to vector<8x128xf32>
    %7 = arith.maximumf %5, %6 : vector<8x128xf32>
    %c0_6 = arith.constant 0 : index
    %c0_7 = arith.constant 0 : index
    %8 = vector.load %arg4[%c0_6, %c0_7] : memref<128x512xf32, #tpu.memory_space<vmem>>, vector<128x512xf32>
    %cst_8 = arith.constant dense<0.000000e+00> : vector<8x512xf32>
    %9 = tpu.matmul %7, %8, %cst_8 {dimension_numbers = #tpu.dot_dimension_numbers<[1], [0], [0], [1], [0, 0, 1, 1], [], []>} : vector<8x128xf32>, vector<128x512xf32>, vector<8x512xf32> -> vector<8x512xf32>
    %c0_9 = arith.constant 0 : index
    %c0_10 = arith.constant 0 : index
    %10 = vector.load %arg5[%c0_9, %c0_10] : memref<1x512xf32, #tpu.memory_space<vmem>>, vector<1x512xf32>
    %11 = vector.broadcast %10 : vector<1x512xf32> to vector<8x512xf32>
    %12 = arith.addf %9, %11 : vector<8x512xf32>
    %cst_11 = arith.constant 0.000000e+00 : f32
    %13 = vector.broadcast %cst_11 : f32 to vector<8x512xf32>
    %14 = arith.maximumf %12, %13 : vector<8x512xf32>
    %c0_12 = arith.constant 0 : index
    %c0_13 = arith.constant 0 : index
    %15 = vector.load %arg6[%c0_12, %c0_13] : memref<8x512xf32, #tpu.memory_space<vmem>>, vector<8x512xf32>
    "tpu.trace_start"() <{level = 10 : i32, message = "ok,nk->on"}> : () -> ()
    %cst_14 = arith.constant dense<0.000000e+00> : vector<8x8xf32>
    %16 = tpu.matmul %15, %14, %cst_14 {dimension_numbers = #tpu.dot_dimension_numbers<[1], [1], [0], [0], [0, 0, 1, 0], [], []>} : vector<8x512xf32>, vector<8x512xf32>, vector<8x8xf32> -> vector<8x8xf32>
    "tpu.trace_stop"() : () -> ()
    %17 = vector.extract_strided_slice %16 {offsets = [0, 0], sizes = [1, 8], strides = [1, 1]} : vector<8x8xf32> to vector<1x8xf32>
    %c0_15 = arith.constant 0 : index
    %c0_16 = arith.constant 0 : index
    %18 = vector.load %arg7[%c0_15, %c0_16] : memref<1x1xf32, #tpu.memory_space<vmem>>, vector<1x1xf32>
    %19 = vector.broadcast %18 : vector<1x1xf32> to vector<1x8xf32>
    %20 = arith.addf %17, %19 : vector<1x8xf32>
    %cst_17 = arith.constant 0.000000e+00 : f32
    %21 = vector.broadcast %cst_17 : f32 to vector<1x8xf32>
    %22 = arith.maximumf %20, %21 : vector<1x8xf32>
    %23 = vector.shape_cast %22 : vector<1x8xf32> to vector<1x1x8xf32>
    %c0_18 = arith.constant 0 : index
    %c0_19 = arith.constant 0 : index
    %c0_20 = arith.constant 0 : index
    %24 = vector.load %arg8[%c0_18, %c0_19, %c0_20] : memref<1x1x8xf32, #tpu.memory_space<vmem>>, vector<1x1x8xf32>
    tpu.vector_store %arg8[%c0_18, %c0_19, %c0_20], %23 {strides = array<i32>} : memref<1x1x8xf32, #tpu.memory_space<vmem>>, vector<1x1x8xf32>,
    return
  }
  func.func @transform_0(%arg0: i32) -> (i32, i32) {
    %c0_i32 = arith.constant 0 : i32
    %c0_i32_0 = arith.constant 0 : i32
    return %arg0, %c0_i32 : i32, i32
  }
  func.func @transform_1(%arg0: i32) -> (i32, i32) {
    %c0_i32 = arith.constant 0 : i32
    %c0_i32_0 = arith.constant 0 : i32
    %c0_i32_1 = arith.constant 0 : i32
    return %c0_i32, %c0_i32_0 : i32, i32
  }
  func.func @transform_2(%arg0: i32) -> (i32, i32) {
    %c0_i32 = arith.constant 0 : i32
    %c0_i32_0 = arith.constant 0 : i32
    %c0_i32_1 = arith.constant 0 : i32
    return %c0_i32, %c0_i32_0 : i32, i32
  }
  func.func @transform_3(%arg0: i32) -> (i32, i32) {
    %c0_i32 = arith.constant 0 : i32
    %c0_i32_0 = arith.constant 0 : i32
    %c0_i32_1 = arith.constant 0 : i32
    return %c0_i32, %c0_i32_0 : i32, i32
  }
  func.func @transform_4(%arg0: i32) -> (i32, i32) {
    %c0_i32 = arith.constant 0 : i32
    %c0_i32_0 = arith.constant 0 : i32
    %c0_i32_1 = arith.constant 0 : i32
    return %c0_i32, %c0_i32_0 : i32, i32
  }
  func.func @transform_5(%arg0: i32) -> (i32, i32) {
    %c0_i32 = arith.constant 0 : i32
    %c0_i32_0 = arith.constant 0 : i32
    %c0_i32_1 = arith.constant 0 : i32
    return %c0_i32, %c0_i32_0 : i32, i32
  }
  func.func @transform_6(%arg0: i32) -> (i32, i32) {
    %c0_i32 = arith.constant 0 : i32
    %c0_i32_0 = arith.constant 0 : i32
    %c0_i32_1 = arith.constant 0 : i32
    return %c0_i32, %c0_i32_0 : i32, i32
  }
  func.func @transform_7(%arg0: i32) -> (i32, i32, i32) {
    %c0_i32 = arith.constant 0 : i32
    %c0_i32_0 = arith.constant 0 : i32
    %c0_i32_1 = arith.constant 0 : i32
    return %arg0, %c0_i32, %c0_i32_0 : i32, i32, i32
  }
}

</mosaic_0001>

<llo_original>
// kernel: tpu_custom_call.1
$region0: #{tpu_custom_call.1}
  #allocation0 [shape = 'u32[]', space=smem, size = 0x4, offset = 0x4, fixed_abs, tag = 'smem constant byte address 0x4 - core index']
  #allocation1 [shape = 'u32[72,128]{1,0:T(1,128)}', space=vmem, size = 0x9000, scoped, tag = 'internal scratch']
  #allocation2 [shape = 'f32[1,1]{1,0:T(1,128)S(1)}', space=vmem, size = 0x200, scoped, tag = 'scoped memory for tpu_custom_call.1']
  %s0 = inlined_call_operand.hbm [shape: f32[8,32], index: 0, kind: input, shape index: {}]
  %s1 = inlined_call_operand.hbm [shape: f32[32,128], index: 1, kind: input, shape index: {}]
  %s2 = inlined_call_operand.vmem [shape: f32[1,128], index: 2, kind: input, shape index: {}]
  %s3 = inlined_call_operand.hbm [shape: f32[128,512], index: 3, kind: input, shape index: {}]
  %s4 = inlined_call_operand.vmem [shape: f32[1,512], index: 4, kind: input, shape index: {}]
  %s5 = inlined_call_operand.hbm [shape: f32[8,512], index: 5, kind: input, shape index: {}]
  %s6 = inlined_call_operand.<no memory space> [shape: f32[1,1], index: 6, kind: input, shape index: {}]
  %s7 = inlined_call_operand.hbm [shape: f32[1,1,8], index: 7, kind: output, shape index: {}]
  %s8 = sld [smem:[#allocation0]]
  $region54: #{tpu_custom_call.1} parent=0
    _
  %s10 = ssub.s32 1, %s8
  %s11 = scalar_select 0, %s10, %s8
  %v12 = vstv %s6
  %13 = vst [vmem:[#allocation2] sm:$0x1] %v12
  $region1: #{tpu_custom_call.1} parent=0
    #allocation3 [shape = 'u8[4096]{0}', space=vmem, size = 0x1000, scoped, tag = 'input window, operand 0, single buffered']
    #allocation4 [shape = 's32[1]{0}', space=sflag, size = 0x4, scoped, tag = 'scoped memory for tpu_custom_call.1']
    #allocation5 [shape = 's32[1]{0}', space=sflag, size = 0x4, scoped, tag = 'scoped memory for tpu_custom_call.1']
    #allocation6 [shape = 'u8[16384]{0}', space=vmem, size = 0x4000, scoped, tag = 'input window, operand 1, single buffered']
    #allocation7 [shape = 's32[1]{0}', space=sflag, size = 0x4, scoped, tag = 'scoped memory for tpu_custom_call.1']
    #allocation8 [shape = 'u8[262144]{0}', space=vmem, size = 0x40000, scoped, tag = 'input window, operand 3, single buffered']
    #allocation9 [shape = 'u8[16384]{0}', space=vmem, size = 0x4000, scoped, tag = 'input window, operand 5, single buffered']
    #allocation10 [shape = 's32[1]{0}', space=sflag, size = 0x4, scoped, tag = 'scoped memory for tpu_custom_call.1']
    #allocation11 [shape = 'u8[512]{0}', space=vmem, size = 0x400, scoped, tag = 'output window, operand 0, single buffered']
    %14 = vsyncpa [#allocation4], 0
    %15 = vsyncpa [#allocation7], 0
    %16 = vsyncpa [#allocation10], 0
    %17 = vsyncpa [#allocation5], 0
    // Predicated region
    $region2: #{tpu_custom_call.1} parent=1 // pred_check
      _
    $region3: #{tpu_custom_call.1} parent=1 // pred_check_branch
      %19 = sbr.rel (0) target = $region5
    $region4: #{tpu_custom_call.1} parent=1 // pred_region
      %21 = vsyncadd [#allocation4], 0
      %s23 = sshll.u32 %s0, 4
      %s24 = int_to_ptr.hbm [resolvable:$true] %s23
      %s25 = sshll.u32 [#allocation3], 4
      %s26 = int_to_ptr.vmem [resolvable:$true] %s25
      %28 = dma.hbm_to_vmem [thread:$0]  %s24, 128, %s26, [#allocation4]
    $region5: #{tpu_custom_call.1} parent=1 // pred_fallthru
      _
    // Predicated region
    $region6: #{tpu_custom_call.1} parent=1 // pred_check
      _
    $region7: #{tpu_custom_call.1} parent=1 // pred_check_branch
      %30 = sbr.rel (0) target = $region9
    $region8: #{tpu_custom_call.1} parent=1 // pred_region
      %32 = vsyncadd [#allocation7], 0
      %s33 = sshll.u32 %s1, 4
      %s34 = int_to_ptr.hbm [resolvable:$true] %s33
      %s35 = sshll.u32 [#allocation6], 4
      %s36 = int_to_ptr.vmem [resolvable:$true] %s35
      %41 = dma.hbm_to_vmem [thread:$0]  %s34, 512, %s36, [#allocation7], 128, 128, 8
    $region9: #{tpu_custom_call.1} parent=1 // pred_fallthru
      _
    // Predicated region
    $region10: #{tpu_custom_call.1} parent=1 // pred_check
      _
    $region11: #{tpu_custom_call.1} parent=1 // pred_check_branch
      %43 = sbr.rel (0) target = $region13
    $region12: #{tpu_custom_call.1} parent=1 // pred_region
      _
    $region13: #{tpu_custom_call.1} parent=1 // pred_fallthru
      _
    // Predicated region
    $region14: #{tpu_custom_call.1} parent=1 // pred_check
      _
    $region15: #{tpu_custom_call.1} parent=1 // pred_check_branch
      %45 = sbr.rel (0) target = $region17
    $region16: #{tpu_custom_call.1} parent=1 // pred_region
      %47 = vsyncadd [#allocation7], 0
      %s48 = sshll.u32 %s3, 4
      %s49 = int_to_ptr.hbm [resolvable:$true] %s48
      %s50 = sshll.u32 [#allocation8], 4
      %s51 = int_to_ptr.vmem [resolvable:$true] %s50
      %56 = dma.hbm_to_vmem [thread:$0]  %s49, 8192, %s51, [#allocation7], 512, 512, 32
    $region17: #{tpu_custom_call.1} parent=1 // pred_fallthru
      _
    // Predicated region
    $region18: #{tpu_custom_call.1} parent=1 // pred_check
      _
    $region19: #{tpu_custom_call.1} parent=1 // pred_check_branch
      %58 = sbr.rel (0) target = $region21
    $region20: #{tpu_custom_call.1} parent=1 // pred_region
      _
    $region21: #{tpu_custom_call.1} parent=1 // pred_fallthru
      _
    // Predicated region
    $region22: #{tpu_custom_call.1} parent=1 // pred_check
      _
    $region23: #{tpu_custom_call.1} parent=1 // pred_check_branch
      %60 = sbr.rel (0) target = $region25
    $region24: #{tpu_custom_call.1} parent=1 // pred_region
      %62 = vsyncadd [#allocation10], 0
      %s64 = sshll.u32 %s5, 4
      %s65 = int_to_ptr.hbm [resolvable:$true] %s64
      %s66 = sshll.u32 [#allocation9], 4
      %s67 = int_to_ptr.vmem [resolvable:$true] %s66
      %69 = dma.hbm_to_vmem [thread:$0]  %s65, 512, %s67, [#allocation10]
    $region25: #{tpu_custom_call.1} parent=1 // pred_fallthru
      _
    // Predicated region
    $region26: #{tpu_custom_call.1} parent=1 // pred_check
      _
    $region27: #{tpu_custom_call.1} parent=1 // pred_check_branch
      %71 = sbr.rel (0) target = $region29
    $region28: #{tpu_custom_call.1} parent=1 // pred_region
      _
    $region29: #{tpu_custom_call.1} parent=1 // pred_fallthru
      _
    // Predicated region
    $region30: #{tpu_custom_call.1} parent=1 // pred_check
      _
    $region31: #{tpu_custom_call.1} parent=1 // pred_check_branch
      %73 = sbr.rel (0) target = $region33
    $region32: #{tpu_custom_call.1} parent=1 // pred_region
      %75 = dma.done [#allocation4], 128
    $region33: #{tpu_custom_call.1} parent=1 // pred_fallthru
      _
    // Predicated region
    $region34: #{tpu_custom_call.1} parent=1 // pred_check
      _
    $region35: #{tpu_custom_call.1} parent=1 // pred_check_branch
      %77 = sbr.rel (0) target = $region37
    $region36: #{tpu_custom_call.1} parent=1 // pred_region
      %79 = dma.done [#allocation7], 512
    $region37: #{tpu_custom_call.1} parent=1 // pred_fallthru
      _
    // Predicated region
    $region38: #{tpu_custom_call.1} parent=1 // pred_check
      _
    $region39: #{tpu_custom_call.1} parent=1 // pred_check_branch
      %81 = sbr.rel (0) target = $region41
    $region40: #{tpu_custom_call.1} parent=1 // pred_region
      %83 = dma.done [#allocation7], 8192
    $region41: #{tpu_custom_call.1} parent=1 // pred_fallthru
      _
    // Predicated region
    $region42: #{tpu_custom_call.1} parent=1 // pred_check
      _
    $region43: #{tpu_custom_call.1} parent=1 // pred_check_branch
      %85 = sbr.rel (0) target = $region45
    $region44: #{tpu_custom_call.1} parent=1 // pred_region
      %87 = dma.done [#allocation10], 512
    $region45: #{tpu_custom_call.1} parent=1 // pred_fallthru
      _
    %v88 = vld [vmem:[#allocation3] sm:$0xff]
    %v89 = vld [vmem:[#allocation6] sm:$0xff]
    %v90 = vld [vmem:[#allocation6 + $0x8] sm:$0xff]
    %v91 = vld [vmem:[#allocation6 + $0x10] sm:$0xff]
    %v92 = vld [vmem:[#allocation6 + $0x18] sm:$0xff]
    %v93 = vld [vmem:[%s2] sm:$0x1]
    %v95 = vperm.slane %v93, 0
    %vm97 = vcmask 261120
    %v99 = vsel %vm97, %v88, 0
    %101 = vmatpush.msra.mxu0 0.0
    %102 = vmatpush.msra.mxu0 0.0
    %103 = vmatpush.msra.mxu0 0.0
    %104 = vmatpush.msra.mxu0 0.0
    %105 = vmatpush.msra.mxu0 0.0
    %106 = vmatpush.msra.mxu0 0.0
    %107 = vmatpush.msra.mxu0 0.0
    %108 = vmatpush.msra.mxu0 0.0
    %109 = vmatpush.msra.mxu0 0.0
    %110 = vmatpush.msra.mxu0 0.0
    %111 = vmatpush.msra.mxu0 0.0
    %112 = vmatpush.msra.mxu0 0.0
    %113 = vmatpush.msra.mxu0 %v92
    %114 = vmatpush.msra.mxu0 %v91
    %115 = vmatpush.msra.mxu0 %v90
    %116 = vmatpush.msra.mxu0 %v89
    %117 = vmatmul.f32.gmra.mxu0 %v99
    %v118 = vpop.f32.mrf.mxu0
    %v119 = vadd.f32 %v95, %v118
    %120 = vdwg.mxu0
    %v121 = vmax.f32 %v119, 0.0
    %v122 = vld [vmem:[#allocation8] sm:$0xff]
    %v123 = vld [vmem:[#allocation8 + $0x8] sm:$0xff]
    %v124 = vld [vmem:[#allocation8 + $0x10] sm:$0xff]
    %v125 = vld [vmem:[#allocation8 + $0x18] sm:$0xff]
    %v126 = vld [vmem:[#allocation8 + $0x20] sm:$0xff]
    %v127 = vld [vmem:[#allocation8 + $0x28] sm:$0xff]
    %v128 = vld [vmem:[#allocation8 + $0x30] sm:$0xff]
    %v129 = vld [vmem:[#allocation8 + $0x38] sm:$0xff]
    %v130 = vld [vmem:[#allocation8 + $0x40] sm:$0xff]
    %v131 = vld [vmem:[#allocation8 + $0x48] sm:$0xff]
    %v132 = vld [vmem:[#allocation8 + $0x50] sm:$0xff]
    %v133 = vld [vmem:[#allocation8 + $0x58] sm:$0xff]
    %v134 = vld [vmem:[#allocation8 + $0x60] sm:$0xff]
    %v135 = vld [vmem:[#allocation8 + $0x68] sm:$0xff]
    %v136 = vld [vmem:[#allocation8 + $0x70] sm:$0xff]
    %v137 = vld [vmem:[#allocation8 + $0x78] sm:$0xff]
    %v138 = vld [vmem:[#allocation8 + $0x80] sm:$0xff]
    %v139 = vld [vmem:[#allocation8 + $0x88] sm:$0xff]
    %v140 = vld [vmem:[#allocation8 + $0x90] sm:$0xff]
    %v141 = vld [vmem:[#allocation8 + $0x98] sm:$0xff]
    %v142 = vld [vmem:[#allocation8 + $0xa0] sm:$0xff]
    %v143 = vld [vmem:[#allocation8 + $0xa8] sm:$0xff]
    %v144 = vld [vmem:[#allocation8 + $0xb0] sm:$0xff]
    %v145 = vld [vmem:[#allocation8 + $0xb8] sm:$0xff]
    %v146 = vld [vmem:[#allocation8 + $0xc0] sm:$0xff]
    %v147 = vld [vmem:[#allocation8 + $0xc8] sm:$0xff]
    %v148 = vld [vmem:[#allocation8 + $0xd0] sm:$0xff]
    %v149 = vld [vmem:[#allocation8 + $0xd8] sm:$0xff]
    %v150 = vld [vmem:[#allocation8 + $0xe0] sm:$0xff]
    %v151 = vld [vmem:[#allocation8 + $0xe8] sm:$0xff]
    %v152 = vld [vmem:[#allocation8 + $0xf0] sm:$0xff]
    %v153 = vld [vmem:[#allocation8 + $0xf8] sm:$0xff]
    %v154 = vld [vmem:[#allocation8 + $0x100] sm:$0xff]
    %v155 = vld [vmem:[#allocation8 + $0x108] sm:$0xff]
    %v156 = vld [vmem:[#allocation8 + $0x110] sm:$0xff]
    %v157 = vld [vmem:[#allocation8 + $0x118] sm:$0xff]
    %v158 = vld [vmem:[#allocation8 + $0x120] sm:$0xff]
    %v159 = vld [vmem:[#allocation8 + $0x128] sm:$0xff]
    %v160 = vld [vmem:[#allocation8 + $0x130] sm:$0xff]
    %v161 = vld [vmem:[#allocation8 + $0x138] sm:$0xff]
    %v162 = vld [vmem:[#allocation8 + $0x140] sm:$0xff]
    %v163 = vld [vmem:[#allocation8 + $0x148] sm:$0xff]
    %v164 = vld [vmem:[#allocation8 + $0x150] sm:$0xff]
    %v165 = vld [vmem:[#allocation8 + $0x158] sm:$0xff]
    %v166 = vld [vmem:[#allocation8 + $0x160] sm:$0xff]
    %v167 = vld [vmem:[#allocation8 + $0x168] sm:$0xff]
    %v168 = vld [vmem:[#allocation8 + $0x170] sm:$0xff]
    %v169 = vld [vmem:[#allocation8 + $0x178] sm:$0xff]
    %v170 = vld [vmem:[#allocation8 + $0x180] sm:$0xff]
    %v171 = vld [vmem:[#allocation8 + $0x188] sm:$0xff]
    %v172 = vld [vmem:[#allocation8 + $0x190] sm:$0xff]
    %v173 = vld [vmem:[#allocation8 + $0x198] sm:$0xff]
    %v174 = vld [vmem:[#allocation8 + $0x1a0] sm:$0xff]
    %v175 = vld [vmem:[#allocation8 + $0x1a8] sm:$0xff]
    %v176 = vld [vmem:[#allocation8 + $0x1b0] sm:$0xff]
    %v177 = vld [vmem:[#allocation8 + $0x1b8] sm:$0xff]
    %v178 = vld [vmem:[#allocation8 + $0x1c0] sm:$0xff]
    %v179 = vld [vmem:[#allocation8 + $0x1c8] sm:$0xff]
    %v180 = vld [vmem:[#allocation8 + $0x1d0] sm:$0xff]
    %v181 = vld [vmem:[#allocation8 + $0x1d8] sm:$0xff]
    %v182 = vld [vmem:[#allocation8 + $0x1e0] sm:$0xff]
    %v183 = vld [vmem:[#allocation8 + $0x1e8] sm:$0xff]
    %v184 = vld [vmem:[#allocation8 + $0x1f0] sm:$0xff]
    %v185 = vld [vmem:[#allocation8 + $0x1f8] sm:$0xff]
    %v186 = vld [vmem:[%s4] sm:$0xf]
    %v188 = vperm.slane %v186, 0
    %v189 = vperm.slane %v186, 1
    %v190 = vperm.slane %v186, 2
    %v191 = vperm.slane %v186, 3
    %196 = vmatpush.msra.mxu0 %v182
    %197 = vmatpush.msra.mxu0 %v178
    %198 = vmatpush.msra.mxu0 %v174
    %199 = vmatpush.msra.mxu0 %v170
    %200 = vmatpush.msra.mxu0 %v166
    %201 = vmatpush.msra.mxu0 %v162
    %202 = vmatpush.msra.mxu0 %v158
    %203 = vmatpush.msra.mxu0 %v154
    %204 = vmatpush.msra.mxu0 %v150
    %205 = vmatpush.msra.mxu0 %v146
    %206 = vmatpush.msra.mxu0 %v142
    %207 = vmatpush.msra.mxu0 %v138
    %208 = vmatpush.msra.mxu0 %v134
    %209 = vmatpush.msra.mxu0 %v130
    %210 = vmatpush.msra.mxu0 %v126
    %211 = vmatpush.msra.mxu0 %v122
    %212 = vmatmul.f32.gmra.mxu0 %v121
    %v213 = vpop.f32.mrf.mxu0
    %v214 = vadd.f32 %v188, %v213
    %215 = vdwg.mxu0
    %216 = vmatpush.msra.mxu0 %v183
    %217 = vmatpush.msra.mxu0 %v179
    %218 = vmatpush.msra.mxu0 %v175
    %219 = vmatpush.msra.mxu0 %v171
    %220 = vmatpush.msra.mxu0 %v167
    %221 = vmatpush.msra.mxu0 %v163
    %222 = vmatpush.msra.mxu0 %v159
    %223 = vmatpush.msra.mxu0 %v155
    %224 = vmatpush.msra.mxu0 %v151
    %225 = vmatpush.msra.mxu0 %v147
    %226 = vmatpush.msra.mxu0 %v143
    %227 = vmatpush.msra.mxu0 %v139
    %228 = vmatpush.msra.mxu0 %v135
    %229 = vmatpush.msra.mxu0 %v131
    %230 = vmatpush.msra.mxu0 %v127
    %231 = vmatpush.msra.mxu0 %v123
    %232 = vmatmul.f32.gmra.mxu0 %v121
    %v233 = vpop.f32.mrf.mxu0
    %v234 = vadd.f32 %v189, %v233
    %235 = vdwg.mxu0
    %236 = vmatpush.msra.mxu0 %v184
    %237 = vmatpush.msra.mxu0 %v180
    %238 = vmatpush.msra.mxu0 %v176
    %239 = vmatpush.msra.mxu0 %v172
    %240 = vmatpush.msra.mxu0 %v168
    %241 = vmatpush.msra.mxu0 %v164
    %242 = vmatpush.msra.mxu0 %v160
    %243 = vmatpush.msra.mxu0 %v156
    %244 = vmatpush.msra.mxu0 %v152
    %245 = vmatpush.msra.mxu0 %v148
    %246 = vmatpush.msra.mxu0 %v144
    %247 = vmatpush.msra.mxu0 %v140
    %248 = vmatpush.msra.mxu0 %v136
    %249 = vmatpush.msra.mxu0 %v132
    %250 = vmatpush.msra.mxu0 %v128
    %251 = vmatpush.msra.mxu0 %v124
    %252 = vmatmul.f32.gmra.mxu0 %v121
    %v253 = vpop.f32.mrf.mxu0
    %v254 = vadd.f32 %v190, %v253
    %255 = vdwg.mxu0
    %256 = vmatpush.msra.mxu0 %v185
    %257 = vmatpush.msra.mxu0 %v181
    %258 = vmatpush.msra.mxu0 %v177
    %259 = vmatpush.msra.mxu0 %v173
    %260 = vmatpush.msra.mxu0 %v169
    %261 = vmatpush.msra.mxu0 %v165
    %262 = vmatpush.msra.mxu0 %v161
    %263 = vmatpush.msra.mxu0 %v157
    %264 = vmatpush.msra.mxu0 %v153
    %265 = vmatpush.msra.mxu0 %v149
    %266 = vmatpush.msra.mxu0 %v145
    %267 = vmatpush.msra.mxu0 %v141
    %268 = vmatpush.msra.mxu0 %v137
    %269 = vmatpush.msra.mxu0 %v133
    %270 = vmatpush.msra.mxu0 %v129
    %271 = vmatpush.msra.mxu0 %v125
    %272 = vmatmul.f32.gmra.mxu0 %v121
    %v273 = vpop.f32.mrf.mxu0
    %v274 = vadd.f32 %v191, %v273
    %275 = vdwg.mxu0
    %v276 = vmax.f32 %v214, 0.0
    %v277 = vmax.f32 %v234, 0.0
    %v278 = vmax.f32 %v254, 0.0
    %v279 = vmax.f32 %v274, 0.0
    %v280 = vld [vmem:[#allocation9] sm:$0xff]
    %v281 = vld [vmem:[#allocation9 + $0x8] sm:$0xff]
    %v282 = vld [vmem:[#allocation9 + $0x10] sm:$0xff]
    %v283 = vld [vmem:[#allocation9 + $0x18] sm:$0xff]
    %284 = vmatpush.xpose.msra.mxu0 0.0
    %285 = vmatpush.xpose.msra.mxu0 0.0
    %286 = vmatpush.xpose.msra.mxu0 0.0
    %287 = vmatpush.xpose.msra.mxu0 0.0
    %288 = vmatpush.xpose.msra.mxu0 0.0
    %289 = vmatpush.xpose.msra.mxu0 0.0
    %290 = vmatpush.xpose.msra.mxu0 0.0
    %291 = vmatpush.xpose.msra.mxu0 0.0
    %292 = vmatpush.xpose.msra.mxu0 0.0
    %293 = vmatpush.xpose.msra.mxu0 0.0
    %294 = vmatpush.xpose.msra.mxu0 0.0
    %295 = vmatpush.xpose.msra.mxu0 0.0
    %296 = vmatpush.xpose.msra.mxu0 0.0
    %297 = vmatpush.xpose.msra.mxu0 0.0
    %298 = vmatpush.xpose.msra.mxu0 0.0
    %299 = vmatpush.xpose.msra.mxu0 %v276
    %300 = vmatmul.f32.gmra.mxu0 %v280
    %v301 = vpop.f32.mrf.mxu0
    %v302 = vadd.f32 0.0, %v301
    %303 = vdwg.mxu0
    %304 = vmatpush.xpose.msra.mxu0 0.0
    %305 = vmatpush.xpose.msra.mxu0 0.0
    %306 = vmatpush.xpose.msra.mxu0 0.0
    %307 = vmatpush.xpose.msra.mxu0 0.0
    %308 = vmatpush.xpose.msra.mxu0 0.0
    %309 = vmatpush.xpose.msra.mxu0 0.0
    %310 = vmatpush.xpose.msra.mxu0 0.0
    %311 = vmatpush.xpose.msra.mxu0 0.0
    %312 = vmatpush.xpose.msra.mxu0 0.0
    %313 = vmatpush.xpose.msra.mxu0 0.0
    %314 = vmatpush.xpose.msra.mxu0 0.0
    %315 = vmatpush.xpose.msra.mxu0 0.0
    %316 = vmatpush.xpose.msra.mxu0 0.0
    %317 = vmatpush.xpose.msra.mxu0 0.0
    %318 = vmatpush.xpose.msra.mxu0 0.0
    %319 = vmatpush.xpose.msra.mxu0 %v277
    %320 = vmatmul.f32.gmra.mxu0 %v281
    %v321 = vpop.f32.mrf.mxu0
    %v322 = vadd.f32 %v302, %v321
    %323 = vdwg.mxu0
    %324 = vmatpush.xpose.msra.mxu0 0.0
    %325 = vmatpush.xpose.msra.mxu0 0.0
    %326 = vmatpush.xpose.msra.mxu0 0.0
    %327 = vmatpush.xpose.msra.mxu0 0.0
    %328 = vmatpush.xpose.msra.mxu0 0.0
    %329 = vmatpush.xpose.msra.mxu0 0.0
    %330 = vmatpush.xpose.msra.mxu0 0.0
    %331 = vmatpush.xpose.msra.mxu0 0.0
    %332 = vmatpush.xpose.msra.mxu0 0.0
    %333 = vmatpush.xpose.msra.mxu0 0.0
    %334 = vmatpush.xpose.msra.mxu0 0.0
    %335 = vmatpush.xpose.msra.mxu0 0.0
    %336 = vmatpush.xpose.msra.mxu0 0.0
    %337 = vmatpush.xpose.msra.mxu0 0.0
    %338 = vmatpush.xpose.msra.mxu0 0.0
    %339 = vmatpush.xpose.msra.mxu0 %v278
    %340 = vmatmul.f32.gmra.mxu0 %v282
    %v341 = vpop.f32.mrf.mxu0
    %v342 = vadd.f32 %v322, %v341
    %343 = vdwg.mxu0
    %344 = vmatpush.xpose.msra.mxu0 0.0
    %345 = vmatpush.xpose.msra.mxu0 0.0
    %346 = vmatpush.xpose.msra.mxu0 0.0
    %347 = vmatpush.xpose.msra.mxu0 0.0
    %348 = vmatpush.xpose.msra.mxu0 0.0
    %349 = vmatpush.xpose.msra.mxu0 0.0
    %350 = vmatpush.xpose.msra.mxu0 0.0
    %351 = vmatpush.xpose.msra.mxu0 0.0
    %352 = vmatpush.xpose.msra.mxu0 0.0
    %353 = vmatpush.xpose.msra.mxu0 0.0
    %354 = vmatpush.xpose.msra.mxu0 0.0
    %355 = vmatpush.xpose.msra.mxu0 0.0
    %356 = vmatpush.xpose.msra.mxu0 0.0
    %357 = vmatpush.xpose.msra.mxu0 0.0
    %358 = vmatpush.xpose.msra.mxu0 0.0
    %359 = vmatpush.xpose.msra.mxu0 %v279
    %360 = vmatmul.f32.gmra.mxu0 %v283
    %v361 = vpop.f32.mrf.mxu0
    %v362 = vadd.f32 %v342, %v361
    %363 = vdwg.mxu0
    %v364 = vld [vmem:[#allocation2] sm:$0x1]
    %366 = vset.pattern.permute.xlu0 0
    %367 = vperm.xlu0 %366, %v364
    %v368 = vpop.permute.xlu0 %367
    %v370 = vperm.slane %v368, 0
    %v371 = vadd.f32 %v362, %v370
    %v372 = vmax.f32 %v371, 0.0
    %vm373 = vcmask 57344
    %374 = vst.msk [vmem:[#allocation11] sm:$0x1] %vm373, %v372
    // Predicated region
    $region46: #{tpu_custom_call.1} parent=1 // pred_check
      _
    $region47: #{tpu_custom_call.1} parent=1 // pred_check_branch
      %376 = sbr.rel (0) target = $region49
    $region48: #{tpu_custom_call.1} parent=1 // pred_region
      %378 = vsyncadd [#allocation5], 0
      %s380 = sshll.u32 [#allocation11], 4
      %s381 = int_to_ptr.vmem [resolvable:$true] %s380
      %s382 = sshll.u32 %s7, 4
      %s383 = int_to_ptr.hbm [resolvable:$true] %s382
      %385 = dma.vmem_to_hbm [thread:$0]  %s381, 16, %s383, [#allocation5]
    $region49: #{tpu_custom_call.1} parent=1 // pred_fallthru
      _
    // Predicated region
    $region50: #{tpu_custom_call.1} parent=1 // pred_check
      _
    $region51: #{tpu_custom_call.1} parent=1 // pred_check_branch
      %387 = sbr.rel (0) target = $region53
    $region52: #{tpu_custom_call.1} parent=1 // pred_region
      %389 = dma.done [#allocation5], 16
    $region53: #{tpu_custom_call.1} parent=1 // pred_fallthru
      _
    %390 = vsyncpa [#allocation4], 1
    %391 = vsyncpa [#allocation7], 1
    %392 = vsyncpa [#allocation10], 1
    %393 = vsyncpa [#allocation5], 1

</llo_original>
